<compile_context>
chip_gen: v7x
topology: tpu7x:2x2x1
jax: 0.10.0
libtpu: 0.0.40
codegen_flags: <defaults>
</compile_context>

<pallas_src>
import jax
import jax.numpy as jnp
from jax.experimental import pallas as pl
from jax.experimental.pallas import tpu as pltpu

BN_EPS = 1e-5
MAX_TILE_B = 1024           # baseline batch-tile cap
MAX_TILE_B_SMALL_IN = 4096  # bigger tiles when input_dim is small (<=512)


# ---------------------------------------------------------------------------
# Kernel
# ---------------------------------------------------------------------------
def deep_svdd_kernel(
    x_ref,
    w1_ref, b1_ref,
    w2_ref, b2_ref,
    w3_ref, b3_ref,
    w4_ref, b4_ref,
    out_ref,
):
    # x tile arrives as f32; cast to bf16 in-kernel (free VPU slot under the
    # MXU-bound body).  Every dot accumulates in f32 on the MXU, bias + ReLU on
    # the VPU, then the activation is re-packed to bf16 for the next MXU pass.
    h = x_ref[...].astype(jnp.bfloat16)

    z = jnp.dot(h, w1_ref[...], preferred_element_type=jnp.float32) + b1_ref[...]
    h = jnp.maximum(z, 0.0).astype(jnp.bfloat16)

    z = jnp.dot(h, w2_ref[...], preferred_element_type=jnp.float32) + b2_ref[...]
    h = jnp.maximum(z, 0.0).astype(jnp.bfloat16)

    z = jnp.dot(h, w3_ref[...], preferred_element_type=jnp.float32) + b3_ref[...]
    h = jnp.maximum(z, 0.0).astype(jnp.bfloat16)

    out_ref[...] = (
        jnp.dot(h, w4_ref[...], preferred_element_type=jnp.float32) + b4_ref[...]
    )


# ---------------------------------------------------------------------------
# Parameter handling (PyTorch-equivalent init + eval-mode BN fold)
# ---------------------------------------------------------------------------
def init_params(key, input_dim, hidden_dims, rep_dim):
    """Raw params mimicking PyTorch init: Linear uniform(+-1/sqrt(fan_in)),
    BatchNorm1d gamma=1, beta=0, running_mean=0, running_var=1.
    Weights stored as (in_features, out_features) = PyTorch W.T."""
    dims = [input_dim] + list(hidden_dims) + [rep_dim]
    params = []
    for i, (din, dout) in enumerate(zip(dims[:-1], dims[1:])):
        key, kw, kb = jax.random.split(key, 3)
        bound = 1.0 / jnp.sqrt(jnp.float32(din))
        w = jax.random.uniform(kw, (din, dout), jnp.float32, -bound, bound)
        b = jax.random.uniform(kb, (1, dout), jnp.float32, -bound, bound)
        if i < len(hidden_dims):  # hidden block -> BatchNorm params
            gamma = jnp.ones((1, dout), jnp.float32)
            beta = jnp.zeros((1, dout), jnp.float32)
            rmean = jnp.zeros((1, dout), jnp.float32)
            rvar = jnp.ones((1, dout), jnp.float32)
            params.extend([w, b, gamma, beta, rmean, rvar])
        else:
            params.extend([w, b])
    return params


def prepare_params(raw_params):
    """Fold eval-mode BatchNorm into each preceding Linear and cast weights to
    bf16 (biases stay f32).  Returns [w1,b1, w2,b2, w3,b3, w4,b4]."""
    p = list(raw_params)
    folded = []
    for _ in range(3):
        w, b, g, be, rm, rv = p[:6]
        p = p[6:]
        scale = g * jax.lax.rsqrt(rv + BN_EPS)          # (1, dout)
        w_f = w * scale                                  # fold into weight cols
        b_f = (b - rm) * scale + be                      # fold into bias
        folded.extend([w_f.astype(jnp.bfloat16), b_f.astype(jnp.float32)])
    w, b = p
    folded.extend([w.astype(jnp.bfloat16), b.astype(jnp.float32)])
    return folded


# ---------------------------------------------------------------------------
# Tiling / VMEM heuristics
# ---------------------------------------------------------------------------
def _round_up(x, m):
    return ((x + m - 1) // m) * m


def _tensorcores_per_chip():
    # v7x has 2 TensorCores per chip; v5e/v6e have 1.
    try:
        kind = jax.devices()[0].device_kind.lower()
    except Exception:
        return 1
    return 2 if "v7" in kind else 1


def _vmem_capacity_bytes():
    try:
        info = pltpu.get_tpu_info()
        cap = getattr(info, "vmem_capacity_bytes", None)
        if cap:
            return int(cap)
    except Exception:
        pass
    return 64 * 1024 * 1024  # conservative (v7x per-TC physical)


def _tile_row_bytes(input_dim, rep_dim, hidden0):
    # Per batch-row VMEM: x f32 double-buffered + in-kernel bf16 copy,
    # out f32 double-buffered, plus f32/bf16 intermediates of the widest layer.
    return (2 * 4 + 2) * input_dim + 2 * 4 * rep_dim + 6 * hidden0


def _choose_tile_b(batch, input_dim, rep_dim, hidden0):
    n_cores = _tensorcores_per_chip()
    max_tile = MAX_TILE_B_SMALL_IN if input_dim <= 512 else MAX_TILE_B

    # VMEM-budget clamp (leave ~half for weights / compiler scratch).
    vmem_budget = _vmem_capacity_bytes() // 2
    row_bytes = _tile_row_bytes(input_dim, rep_dim, hidden0)
    vmem_tile_cap = max(8, (vmem_budget // max(row_bytes, 1)) // 8 * 8)
    max_tile = min(max_tile, vmem_tile_cap)

    # Split evenly: at least enough tiles to respect the cap, and >= n_cores
    # tiles (v7x megacore) when the batch is big enough to split.
    min_tiles = n_cores if batch >= 8 * n_cores else 1
    num_tiles = max(pl.cdiv(batch, max_tile), min_tiles)
    return _round_up(pl.cdiv(batch, num_tiles), 8)


def _vmem_limit_bytes(params, tile_b, input_dim, rep_dim, hidden0):
    weight_bytes = sum(int(p.size) * p.dtype.itemsize for p in params)
    need = 2 * weight_bytes + tile_b * _tile_row_bytes(input_dim, rep_dim, hidden0)
    physical = _vmem_capacity_bytes()
    return int(min(physical, max(2 * need, 32 * 1024 * 1024)))


# ---------------------------------------------------------------------------
# Wrapper
# ---------------------------------------------------------------------------
@jax.jit
def deep_svdd_forward(x, params):
    batch, input_dim = x.shape
    hidden0 = params[0].shape[-1]
    rep_dim = params[-1].shape[-1]

    tile_b = _choose_tile_b(batch, input_dim, rep_dim, hidden0)
    b_pad = _round_up(batch, tile_b)

    xf = x.astype(jnp.float32)
    if b_pad != batch:
        # Padded rows are independent (no batch-axis reduction in the kernel)
        # and sliced off below; VMEM refs have no bounds checks so the tail
        # block must be materialized.
        xf = jnp.pad(xf, ((0, b_pad - batch), (0, 0)))

    grid = (b_pad // tile_b,)

    def resident_spec(a):
        # Weights/biases: full block, constant index -> stay resident in VMEM.
        return pl.BlockSpec(a.shape, lambda i: (0, 0))

    in_specs = [pl.BlockSpec((tile_b, input_dim), lambda i: (i, 0))]
    in_specs += [resident_spec(a) for a in params]
    out_spec = pl.BlockSpec((tile_b, rep_dim), lambda i: (i, 0))

    dims = [input_dim] + [params[2 * j].shape[-1] for j in range(4)]
    flops = 2 * b_pad * sum(dims[j] * dims[j + 1] for j in range(4))
    weight_bytes = sum(int(p.size) * p.dtype.itemsize for p in params)
    bytes_accessed = b_pad * input_dim * 4 + b_pad * rep_dim * 4 + weight_bytes

    out = pl.pallas_call(
        deep_svdd_kernel,
        out_shape=jax.ShapeDtypeStruct((b_pad, rep_dim), jnp.float32),
        grid=grid,
        in_specs=in_specs,
        out_specs=out_spec,
        compiler_params=pltpu.CompilerParams(
            dimension_semantics=("parallel",),  # megacore-shardable batch axis
            vmem_limit_bytes=_vmem_limit_bytes(
                params, tile_b, input_dim, rep_dim, hidden0
            ),
        ),
        cost_estimate=pl.CostEstimate(
            flops=flops, transcendentals=0, bytes_accessed=bytes_accessed
        ),
    )(xf, *params)

    return out[:batch]


# ---------------------------------------------------------------------------
# References
# ---------------------------------------------------------------------------
def reference_forward_bf16(x, folded):
    """Plain-JAX reference with identical bf16/f32-accum math as the kernel."""
    h = x.astype(jnp.bfloat16)
    for i in range(3):
        w, b = folded[2 * i], folded[2 * i + 1]
        z = jnp.dot(h, w, preferred_element_type=jnp.float32) + b
        h = jnp.maximum(z, 0.0).astype(jnp.bfloat16)
    w, b = folded[6], folded[7]
    return jnp.dot(h, w, preferred_element_type=jnp.float32) + b


def reference_forward_f32(x, raw_params):
    """Full-precision, unfolded reference (Linear + BN(eval) + ReLU)."""
    p = list(raw_params)
    h = x
    for _ in range(3):
        w, b, g, be, rm, rv = p[:6]
        p = p[6:]
        z = h @ w + b
        z = (z - rm) / jnp.sqrt(rv + BN_EPS) * g + be
        h = jnp.maximum(z, 0.0)
    w, b = p
    return h @ w + b


if __name__ == "__main__":
    input_dim = 64
    hidden_dims = [128, 64, 32]
    rep_dim = 32
    batch = 8

    key = jax.random.PRNGKey(0)
    kx, kp = jax.random.split(key)
    x = jax.random.normal(kx, (batch, input_dim), jnp.float32)

    raw_params = init_params(kp, input_dim, hidden_dims, rep_dim)
    params = prepare_params(raw_params)

    out = deep_svdd_forward(x, params)
    out = jax.block_until_ready(out)
    assert out.shape == (batch, rep_dim), out.shape

    # Exact-math check (same bf16 operands / f32 accumulation).
    ref_bf16 = reference_forward_bf16(x, params)
    assert jnp.allclose(out, ref_bf16, atol=1e-3, rtol=1e-3), (
        float(jnp.max(jnp.abs(out - ref_bf16)))
    )

    # Loose check vs the original unfolded f32 Linear+BN+ReLU math (bf16 weight
    # rounding is the only difference).
    ref_f32 = reference_forward_f32(x, raw_params)
    assert jnp.allclose(out, ref_f32, atol=5e-2, rtol=5e-2), (
        float(jnp.max(jnp.abs(out - ref_f32)))
    )

    print("KERNEL_OK")
</pallas_src>

<mosaic_0001>
module attributes {stable_mosaic.version = 11 : i64} {
  func.func @deep_svdd_kernel(%arg0: i32, %arg1: memref<8x64xf32, #tpu.memory_space<vmem>>, %arg2: memref<64x128xbf16, #tpu.memory_space<vmem>>, %arg3: memref<1x128xf32, #tpu.memory_space<vmem>>, %arg4: memref<128x64xbf16, #tpu.memory_space<vmem>>, %arg5: memref<1x64xf32, #tpu.memory_space<vmem>>, %arg6: memref<64x32xbf16, #tpu.memory_space<vmem>>, %arg7: memref<1x32xf32, #tpu.memory_space<vmem>>, %arg8: memref<32x32xbf16, #tpu.memory_space<vmem>>, %arg9: memref<1x32xf32, #tpu.memory_space<vmem>>, %arg10: memref<8x32xf32, #tpu.memory_space<vmem>>) attributes {dimension_semantics = [#tpu.dimension_semantics<parallel>], iteration_bounds = array<i64: 1>, scalar_prefetch = 0 : i64, scratch_operands = 0 : i64, tpu.core_type = #tpu.core_type<tc>, window_params = [{transform_indices = @transform_0, window_bounds = array<i64: 8, 64>}, {pipeline_mode = #tpu.pipeline_mode<synchronous>, transform_indices = @transform_1, window_bounds = array<i64: 64, 128>}, {pipeline_mode = #tpu.pipeline_mode<synchronous>, transform_indices = @transform_2, window_bounds = array<i64: 1, 128>}, {pipeline_mode = #tpu.pipeline_mode<synchronous>, transform_indices = @transform_3, window_bounds = array<i64: 128, 64>}, {pipeline_mode = #tpu.pipeline_mode<synchronous>, transform_indices = @transform_4, window_bounds = array<i64: 1, 64>}, {pipeline_mode = #tpu.pipeline_mode<synchronous>, transform_indices = @transform_5, window_bounds = array<i64: 64, 32>}, {pipeline_mode = #tpu.pipeline_mode<synchronous>, transform_indices = @transform_6, window_bounds = array<i64: 1, 32>}, {pipeline_mode = #tpu.pipeline_mode<synchronous>, transform_indices = @transform_7, window_bounds = array<i64: 32, 32>}, {pipeline_mode = #tpu.pipeline_mode<synchronous>, transform_indices = @transform_8, window_bounds = array<i64: 1, 32>}, {transform_indices = @transform_9, window_bounds = array<i64: 8, 32>}]} {
    %c0 = arith.constant 0 : index
    %c0_0 = arith.constant 0 : index
    %0 = vector.load %arg1[%c0, %c0_0] : memref<8x64xf32, #tpu.memory_space<vmem>>, vector<8x64xf32>
    %1 = arith.truncf %0 : vector<8x64xf32> to vector<8x64xbf16>
    %c0_1 = arith.constant 0 : index
    %c0_2 = arith.constant 0 : index
    %2 = vector.load %arg2[%c0_1, %c0_2] : memref<64x128xbf16, #tpu.memory_space<vmem>>, vector<64x128xbf16>
    %cst = arith.constant dense<0.000000e+00> : vector<8x128xf32>
    %3 = tpu.matmul %1, %2, %cst {dimension_numbers = #tpu.dot_dimension_numbers<[1], [0], [0], [1], [0, 0, 1, 1], [], []>} : vector<8x64xbf16>, vector<64x128xbf16>, vector<8x128xf32> -> vector<8x128xf32>
    %c0_3 = arith.constant 0 : index
    %c0_4 = arith.constant 0 : index
    %4 = vector.load %arg3[%c0_3, %c0_4] : memref<1x128xf32, #tpu.memory_space<vmem>>, vector<1x128xf32>
    %5 = vector.broadcast %4 : vector<1x128xf32> to vector<8x128xf32>
    %6 = arith.addf %3, %5 : vector<8x128xf32>
    %cst_5 = arith.constant 0.000000e+00 : f32
    %7 = vector.broadcast %cst_5 : f32 to vector<8x128xf32>
    %8 = arith.maximumf %6, %7 : vector<8x128xf32>
    %9 = arith.truncf %8 : vector<8x128xf32> to vector<8x128xbf16>
    %c0_6 = arith.constant 0 : index
    %c0_7 = arith.constant 0 : index
    %10 = vector.load %arg4[%c0_6, %c0_7] : memref<128x64xbf16, #tpu.memory_space<vmem>>, vector<128x64xbf16>
    %cst_8 = arith.constant dense<0.000000e+00> : vector<8x64xf32>
    %11 = tpu.matmul %9, %10, %cst_8 {dimension_numbers = #tpu.dot_dimension_numbers<[1], [0], [0], [1], [0, 0, 1, 1], [], []>} : vector<8x128xbf16>, vector<128x64xbf16>, vector<8x64xf32> -> vector<8x64xf32>
    %c0_9 = arith.constant 0 : index
    %c0_10 = arith.constant 0 : index
    %12 = vector.load %arg5[%c0_9, %c0_10] : memref<1x64xf32, #tpu.memory_space<vmem>>, vector<1x64xf32>
    %13 = vector.broadcast %12 : vector<1x64xf32> to vector<8x64xf32>
    %14 = arith.addf %11, %13 : vector<8x64xf32>
    %cst_11 = arith.constant 0.000000e+00 : f32
    %15 = vector.broadcast %cst_11 : f32 to vector<8x64xf32>
    %16 = arith.maximumf %14, %15 : vector<8x64xf32>
    %17 = arith.truncf %16 : vector<8x64xf32> to vector<8x64xbf16>
    %c0_12 = arith.constant 0 : index
    %c0_13 = arith.constant 0 : index
    %18 = vector.load %arg6[%c0_12, %c0_13] : memref<64x32xbf16, #tpu.memory_space<vmem>>, vector<64x32xbf16>
    %cst_14 = arith.constant dense<0.000000e+00> : vector<8x32xf32>
    %19 = tpu.matmul %17, %18, %cst_14 {dimension_numbers = #tpu.dot_dimension_numbers<[1], [0], [0], [1], [0, 0, 1, 1], [], []>} : vector<8x64xbf16>, vector<64x32xbf16>, vector<8x32xf32> -> vector<8x32xf32>
    %c0_15 = arith.constant 0 : index
    %c0_16 = arith.constant 0 : index
    %20 = vector.load %arg7[%c0_15, %c0_16] : memref<1x32xf32, #tpu.memory_space<vmem>>, vector<1x32xf32>
    %21 = vector.broadcast %20 : vector<1x32xf32> to vector<8x32xf32>
    %22 = arith.addf %19, %21 : vector<8x32xf32>
    %cst_17 = arith.constant 0.000000e+00 : f32
    %23 = vector.broadcast %cst_17 : f32 to vector<8x32xf32>
    %24 = arith.maximumf %22, %23 : vector<8x32xf32>
    %25 = arith.truncf %24 : vector<8x32xf32> to vector<8x32xbf16>
    %c0_18 = arith.constant 0 : index
    %c0_19 = arith.constant 0 : index
    %26 = vector.load %arg8[%c0_18, %c0_19] : memref<32x32xbf16, #tpu.memory_space<vmem>>, vector<32x32xbf16>
    %cst_20 = arith.constant dense<0.000000e+00> : vector<8x32xf32>
    %27 = tpu.matmul %25, %26, %cst_20 {dimension_numbers = #tpu.dot_dimension_numbers<[1], [0], [0], [1], [0, 0, 1, 1], [], []>} : vector<8x32xbf16>, vector<32x32xbf16>, vector<8x32xf32> -> vector<8x32xf32>
    %c0_21 = arith.constant 0 : index
    %c0_22 = arith.constant 0 : index
    %28 = vector.load %arg9[%c0_21, %c0_22] : memref<1x32xf32, #tpu.memory_space<vmem>>, vector<1x32xf32>
    %29 = vector.broadcast %28 : vector<1x32xf32> to vector<8x32xf32>
    %30 = arith.addf %27, %29 : vector<8x32xf32>
    %c0_23 = arith.constant 0 : index
    %c0_24 = arith.constant 0 : index
    %31 = vector.load %arg10[%c0_23, %c0_24] : memref<8x32xf32, #tpu.memory_space<vmem>>, vector<8x32xf32>
    tpu.vector_store %arg10[%c0_23, %c0_24], %30 {strides = array<i32>} : memref<8x32xf32, #tpu.memory_space<vmem>>, vector<8x32xf32>,
    return
  }
  func.func @transform_0(%arg0: i32) -> (i32, i32) {
    %c0_i32 = arith.constant 0 : i32
    %c0_i32_0 = arith.constant 0 : i32
    return %arg0, %c0_i32 : i32, i32
  }
  func.func @transform_1(%arg0: i32) -> (i32, i32) {
    %c0_i32 = arith.constant 0 : i32
    %c0_i32_0 = arith.constant 0 : i32
    %c0_i32_1 = arith.constant 0 : i32
    return %c0_i32, %c0_i32_0 : i32, i32
  }
  func.func @transform_2(%arg0: i32) -> (i32, i32) {
    %c0_i32 = arith.constant 0 : i32
    %c0_i32_0 = arith.constant 0 : i32
    %c0_i32_1 = arith.constant 0 : i32
    return %c0_i32, %c0_i32_0 : i32, i32
  }
  func.func @transform_3(%arg0: i32) -> (i32, i32) {
    %c0_i32 = arith.constant 0 : i32
    %c0_i32_0 = arith.constant 0 : i32
    %c0_i32_1 = arith.constant 0 : i32
    return %c0_i32, %c0_i32_0 : i32, i32
  }
  func.func @transform_4(%arg0: i32) -> (i32, i32) {
    %c0_i32 = arith.constant 0 : i32
    %c0_i32_0 = arith.constant 0 : i32
    %c0_i32_1 = arith.constant 0 : i32
    return %c0_i32, %c0_i32_0 : i32, i32
  }
  func.func @transform_5(%arg0: i32) -> (i32, i32) {
    %c0_i32 = arith.constant 0 : i32
    %c0_i32_0 = arith.constant 0 : i32
    %c0_i32_1 = arith.constant 0 : i32
    return %c0_i32, %c0_i32_0 : i32, i32
  }
  func.func @transform_6(%arg0: i32) -> (i32, i32) {
    %c0_i32 = arith.constant 0 : i32
    %c0_i32_0 = arith.constant 0 : i32
    %c0_i32_1 = arith.constant 0 : i32
    return %c0_i32, %c0_i32_0 : i32, i32
  }
  func.func @transform_7(%arg0: i32) -> (i32, i32) {
    %c0_i32 = arith.constant 0 : i32
    %c0_i32_0 = arith.constant 0 : i32
    %c0_i32_1 = arith.constant 0 : i32
    return %c0_i32, %c0_i32_0 : i32, i32
  }
  func.func @transform_8(%arg0: i32) -> (i32, i32) {
    %c0_i32 = arith.constant 0 : i32
    %c0_i32_0 = arith.constant 0 : i32
    %c0_i32_1 = arith.constant 0 : i32
    return %c0_i32, %c0_i32_0 : i32, i32
  }
  func.func @transform_9(%arg0: i32) -> (i32, i32) {
    %c0_i32 = arith.constant 0 : i32
    %c0_i32_0 = arith.constant 0 : i32
    return %arg0, %c0_i32 : i32, i32
  }
}

</mosaic_0001>

<llo_original>
// kernel: deep_svdd_forward.1
$region0: #{deep_svdd_forward.1}
  #allocation0 [shape = 'u32[]', space=smem, size = 0x4, offset = 0x4, fixed_abs, tag = 'smem constant byte address 0x4 - core index']
  #allocation1 [shape = 'u32[144,128]{1,0:T(1,128)}', space=vmem, size = 0x12000, scoped, tag = 'internal scratch']
  %s0 = inlined_call_operand.vmem [shape: f32[8,64], index: 0, kind: input, shape index: {}]
  %s1 = inlined_call_operand.vmem [shape: bf16[64,128], index: 1, kind: input, shape index: {}]
  %s2 = inlined_call_operand.vmem [shape: f32[1,128], index: 2, kind: input, shape index: {}]
  %s3 = inlined_call_operand.vmem [shape: bf16[128,64], index: 3, kind: input, shape index: {}]
  %s4 = inlined_call_operand.vmem [shape: f32[1,64], index: 4, kind: input, shape index: {}]
  %s5 = inlined_call_operand.vmem [shape: bf16[64,32], index: 5, kind: input, shape index: {}]
  %s6 = inlined_call_operand.vmem [shape: f32[1,32], index: 6, kind: input, shape index: {}]
  %s7 = inlined_call_operand.vmem [shape: bf16[32,32], index: 7, kind: input, shape index: {}]
  %s8 = inlined_call_operand.vmem [shape: f32[1,32], index: 8, kind: input, shape index: {}]
  %s9 = inlined_call_operand.hbm [shape: f32[8,32], index: 9, kind: output, shape index: {}]
  %s10 = sld [smem:[#allocation0]]
  $region46: #{deep_svdd_forward.1} parent=0
    _
  %s12 = ssub.s32 1, %s10
  %s13 = scalar_select 0, %s12, %s10
  $region1: #{deep_svdd_forward.1} parent=0
    #allocation2 [shape = 'u8[4096]{0}', space=vmem, size = 0x1000, scoped, tag = 'output window, operand 0, single buffered']
    #allocation3 [shape = 's32[1]{0}', space=sflag, size = 0x4, scoped, tag = 'scoped memory for deep_svdd_forward.1']
    %14 = vsyncpa [#allocation3], 0
    // Predicated region
    $region2: #{deep_svdd_forward.1} parent=1 // pred_check
      _
    $region3: #{deep_svdd_forward.1} parent=1 // pred_check_branch
      %16 = sbr.rel (0) target = $region5
    $region4: #{deep_svdd_forward.1} parent=1 // pred_region
      _
    $region5: #{deep_svdd_forward.1} parent=1 // pred_fallthru
      _
    // Predicated region
    $region6: #{deep_svdd_forward.1} parent=1 // pred_check
      _
    $region7: #{deep_svdd_forward.1} parent=1 // pred_check_branch
      %18 = sbr.rel (0) target = $region9
    $region8: #{deep_svdd_forward.1} parent=1 // pred_region
      _
    $region9: #{deep_svdd_forward.1} parent=1 // pred_fallthru
      _
    // Predicated region
    $region10: #{deep_svdd_forward.1} parent=1 // pred_check
      _
    $region11: #{deep_svdd_forward.1} parent=1 // pred_check_branch
      %20 = sbr.rel (0) target = $region13
    $region12: #{deep_svdd_forward.1} parent=1 // pred_region
      _
    $region13: #{deep_svdd_forward.1} parent=1 // pred_fallthru
      _
    // Predicated region
    $region14: #{deep_svdd_forward.1} parent=1 // pred_check
      _
    $region15: #{deep_svdd_forward.1} parent=1 // pred_check_branch
      %22 = sbr.rel (0) target = $region17
    $region16: #{deep_svdd_forward.1} parent=1 // pred_region
      _
    $region17: #{deep_svdd_forward.1} parent=1 // pred_fallthru
      _
    // Predicated region
    $region18: #{deep_svdd_forward.1} parent=1 // pred_check
      _
    $region19: #{deep_svdd_forward.1} parent=1 // pred_check_branch
      %24 = sbr.rel (0) target = $region21
    $region20: #{deep_svdd_forward.1} parent=1 // pred_region
      _
    $region21: #{deep_svdd_forward.1} parent=1 // pred_fallthru
      _
    // Predicated region
    $region22: #{deep_svdd_forward.1} parent=1 // pred_check
      _
    $region23: #{deep_svdd_forward.1} parent=1 // pred_check_branch
      %26 = sbr.rel (0) target = $region25
    $region24: #{deep_svdd_forward.1} parent=1 // pred_region
      _
    $region25: #{deep_svdd_forward.1} parent=1 // pred_fallthru
      _
    // Predicated region
    $region26: #{deep_svdd_forward.1} parent=1 // pred_check
      _
    $region27: #{deep_svdd_forward.1} parent=1 // pred_check_branch
      %28 = sbr.rel (0) target = $region29
    $region28: #{deep_svdd_forward.1} parent=1 // pred_region
      _
    $region29: #{deep_svdd_forward.1} parent=1 // pred_fallthru
      _
    // Predicated region
    $region30: #{deep_svdd_forward.1} parent=1 // pred_check
      _
    $region31: #{deep_svdd_forward.1} parent=1 // pred_check_branch
      %30 = sbr.rel (0) target = $region33
    $region32: #{deep_svdd_forward.1} parent=1 // pred_region
      _
    $region33: #{deep_svdd_forward.1} parent=1 // pred_fallthru
      _
    // Predicated region
    $region34: #{deep_svdd_forward.1} parent=1 // pred_check
      _
    $region35: #{deep_svdd_forward.1} parent=1 // pred_check_branch
      %32 = sbr.rel (0) target = $region37
    $region36: #{deep_svdd_forward.1} parent=1 // pred_region
      _
    $region37: #{deep_svdd_forward.1} parent=1 // pred_fallthru
      _
    %v34 = vld [vmem:[%s0] sm:$0xff]
    %v35 = vpack.c.bf16 %v34, %v34
    %v36 = vld [vmem:[%s1] sm:$0xf]
    %v37 = vld [vmem:[%s1 + $0x4] sm:$0xf]
    %v38 = vld [vmem:[%s1 + $0x8] sm:$0xf]
    %v39 = vld [vmem:[%s1 + $0xc] sm:$0xf]
    %v40 = vld [vmem:[%s1 + $0x10] sm:$0xf]
    %v41 = vld [vmem:[%s1 + $0x14] sm:$0xf]
    %v42 = vld [vmem:[%s1 + $0x18] sm:$0xf]
    %v43 = vld [vmem:[%s1 + $0x1c] sm:$0xf]
    %v44 = vld [vmem:[%s2] sm:$0x1]
    %v46 = vlaneseq
    %v47 = vshrl.u32 %v46, 7
    %v48 = vsub.s32 0, %v47
    %v49 = vrot.slane %v44, %v48
    %v59 = vunpack.c.l.b16 %v36
    %v60 = vunpack.c.l.b16 %v37
    %v61 = vunpack.c.l.b16 %v38
    %v62 = vunpack.c.l.b16 %v39
    %v63 = vunpack.c.l.b16 %v40
    %v64 = vunpack.c.l.b16 %v41
    %v65 = vunpack.c.l.b16 %v42
    %v66 = vunpack.c.l.b16 %v43
    %v67 = vpack.c.b16 %v60, %v59
    %v68 = vpack.c.b16 %v62, %v61
    %v69 = vpack.c.b16 %v64, %v63
    %v70 = vpack.c.b16 %v66, %v65
    %vm75 = vcmask 523264
    %v77 = vsel %vm75, %v35, 0
    %79 = vmatprep.subr.bf16.mxu0 0
    %80 = vmatpush1.bf16.msra.mxu0 %v67
    %81 = vmatprep.subr.bf16.mxu0 0
    %82 = vmatpush1.bf16.msra.mxu0 %v68
    %83 = vmatprep.subr.bf16.mxu0 0
    %84 = vmatpush1.bf16.msra.mxu0 %v69
    %85 = vmatprep.subr.bf16.mxu0 0
    %86 = vmatpush1.bf16.msra.mxu0 %v70
    %87 = vmatprep.subr.bf16.mxu0 0
    %88 = vmatpush1.bf16.msra.mxu0 0
    %89 = vmatprep.subr.bf16.mxu0 0
    %90 = vmatpush1.bf16.msra.mxu0 0
    %91 = vmatprep.subr.bf16.mxu0 0
    %92 = vmatpush1.bf16.msra.mxu0 0
    %93 = vmatprep.subr.bf16.mxu0 0
    %94 = vmatpush1.bf16.msra.mxu0 0
    %95 = vmatprep.subr.bf16.mxu0 0
    %96 = vmatpush1.bf16.msra.mxu0 0
    %97 = vmatprep.subr.bf16.mxu0 0
    %98 = vmatpush1.bf16.msra.mxu0 0
    %99 = vmatprep.subr.bf16.mxu0 0
    %100 = vmatpush1.bf16.msra.mxu0 0
    %101 = vmatprep.subr.bf16.mxu0 0
    %102 = vmatpush1.bf16.msra.mxu0 0
    %103 = vmatprep.subr.bf16.mxu0 0
    %104 = vmatpush1.bf16.msra.mxu0 0
    %105 = vmatprep.subr.bf16.mxu0 0
    %106 = vmatpush1.bf16.msra.mxu0 0
    %107 = vmatprep.subr.bf16.mxu0 0
    %108 = vmatpush1.bf16.msra.mxu0 0
    %109 = vmatprep.subr.bf16.mxu0 0
    %110 = vmatpush1.bf16.msra.mxu0 0
    %111 = vmatprep.mubr.bf16.mxu0 0
    %112 = vmatmul.mubr.bf16.gmra.mrb[0].mxu0 %v77
    %v113 = vpop.f32.mrb[0].mxu0
    %v114 = vadd.f32 %v49, %v113
    %v115 = vpop.f32.mrb[0].mxu0
    %v116 = vpop.f32.mrb[0].mxu0
    %v117 = vpop.f32.mrb[0].mxu0
    %118 = vdwg.mxu0
    %v119 = vmax.f32 %v114, 0.0
    %v120 = vpack.c.bf16 %v119, %v119
    %v121 = vld [vmem:[%s3] sm:$0xf]
    %v122 = vld [vmem:[%s3 + $0x4] sm:$0xf]
    %v123 = vld [vmem:[%s3 + $0x8] sm:$0xf]
    %v124 = vld [vmem:[%s3 + $0xc] sm:$0xf]
    %v125 = vld [vmem:[%s3 + $0x10] sm:$0xf]
    %v126 = vld [vmem:[%s3 + $0x14] sm:$0xf]
    %v127 = vld [vmem:[%s3 + $0x18] sm:$0xf]
    %v128 = vld [vmem:[%s3 + $0x1c] sm:$0xf]
    %v129 = vld [vmem:[%s3 + $0x20] sm:$0xf]
    %v130 = vld [vmem:[%s3 + $0x24] sm:$0xf]
    %v131 = vld [vmem:[%s3 + $0x28] sm:$0xf]
    %v132 = vld [vmem:[%s3 + $0x2c] sm:$0xf]
    %v133 = vld [vmem:[%s3 + $0x30] sm:$0xf]
    %v134 = vld [vmem:[%s3 + $0x34] sm:$0xf]
    %v135 = vld [vmem:[%s3 + $0x38] sm:$0xf]
    %v136 = vld [vmem:[%s3 + $0x3c] sm:$0xf]
    %v137 = vld [vmem:[%s4] sm:$0x1]
    %v139 = vlaneseq
    %v140 = vshrl.u32 %v139, 7
    %v141 = vsub.s32 0, %v140
    %v142 = vrot.slane %v137, %v141
    %v160 = vunpack.c.l.b16 %v121
    %v161 = vunpack.c.l.b16 %v122
    %v162 = vunpack.c.l.b16 %v123
    %v163 = vunpack.c.l.b16 %v124
    %v164 = vunpack.c.l.b16 %v125
    %v165 = vunpack.c.l.b16 %v126
    %v166 = vunpack.c.l.b16 %v127
    %v167 = vunpack.c.l.b16 %v128
    %v168 = vunpack.c.l.b16 %v129
    %v169 = vunpack.c.l.b16 %v130
    %v170 = vunpack.c.l.b16 %v131
    %v171 = vunpack.c.l.b16 %v132
    %v172 = vunpack.c.l.b16 %v133
    %v173 = vunpack.c.l.b16 %v134
    %v174 = vunpack.c.l.b16 %v135
    %v175 = vunpack.c.l.b16 %v136
    %v176 = vpack.c.b16 %v161, %v160
    %v177 = vpack.c.b16 %v163, %v162
    %v178 = vpack.c.b16 %v165, %v164
    %v179 = vpack.c.b16 %v167, %v166
    %v180 = vpack.c.b16 %v169, %v168
    %v181 = vpack.c.b16 %v171, %v170
    %v182 = vpack.c.b16 %v173, %v172
    %v183 = vpack.c.b16 %v175, %v174
    %192 = vmatprep.subr.bf16.mxu0 0
    %193 = vmatpush1.bf16.msra.mxu0 %v176
    %194 = vmatprep.subr.bf16.mxu0 0
    %195 = vmatpush1.bf16.msra.mxu0 %v177
    %196 = vmatprep.subr.bf16.mxu0 0
    %197 = vmatpush1.bf16.msra.mxu0 %v178
    %198 = vmatprep.subr.bf16.mxu0 0
    %199 = vmatpush1.bf16.msra.mxu0 %v179
    %200 = vmatprep.subr.bf16.mxu0 0
    %201 = vmatpush1.bf16.msra.mxu0 %v180
    %202 = vmatprep.subr.bf16.mxu0 0
    %203 = vmatpush1.bf16.msra.mxu0 %v181
    %204 = vmatprep.subr.bf16.mxu0 0
    %205 = vmatpush1.bf16.msra.mxu0 %v182
    %206 = vmatprep.subr.bf16.mxu0 0
    %207 = vmatpush1.bf16.msra.mxu0 %v183
    %208 = vmatprep.subr.bf16.mxu0 0
    %209 = vmatpush1.bf16.msra.mxu0 0
    %210 = vmatprep.subr.bf16.mxu0 0
    %211 = vmatpush1.bf16.msra.mxu0 0
    %212 = vmatprep.subr.bf16.mxu0 0
    %213 = vmatpush1.bf16.msra.mxu0 0
    %214 = vmatprep.subr.bf16.mxu0 0
    %215 = vmatpush1.bf16.msra.mxu0 0
    %216 = vmatprep.subr.bf16.mxu0 0
    %217 = vmatpush1.bf16.msra.mxu0 0
    %218 = vmatprep.subr.bf16.mxu0 0
    %219 = vmatpush1.bf16.msra.mxu0 0
    %220 = vmatprep.subr.bf16.mxu0 0
    %221 = vmatpush1.bf16.msra.mxu0 0
    %222 = vmatprep.subr.bf16.mxu0 0
    %223 = vmatpush1.bf16.msra.mxu0 0
    %224 = vmatprep.mubr.bf16.mxu0 0
    %225 = vmatmul.mubr.bf16.gmra.mrb[0].mxu0 %v120
    %v226 = vpop.f32.mrb[0].mxu0
    %v227 = vadd.f32 %v142, %v226
    %v228 = vpop.f32.mrb[0].mxu0
    %v229 = vpop.f32.mrb[0].mxu0
    %v230 = vpop.f32.mrb[0].mxu0
    %231 = vdwg.mxu0
    %v232 = vmax.f32 %v227, 0.0
    %v233 = vpack.c.bf16 %v232, %v232
    %v234 = vld [vmem:[%s5] sm:$0xf]
    %v235 = vld [vmem:[%s5 + $0x4] sm:$0xf]
    %v236 = vld [vmem:[%s5 + $0x8] sm:$0xf]
    %v237 = vld [vmem:[%s5 + $0xc] sm:$0xf]
    %v238 = vld [vmem:[%s5 + $0x10] sm:$0xf]
    %v239 = vld [vmem:[%s5 + $0x14] sm:$0xf]
    %v240 = vld [vmem:[%s5 + $0x18] sm:$0xf]
    %v241 = vld [vmem:[%s5 + $0x1c] sm:$0xf]
    %v242 = vld [vmem:[%s6] sm:$0x1]
    %v244 = vlaneseq
    %v245 = vshrl.u32 %v244, 7
    %v246 = vsub.s32 0, %v245
    %v247 = vrot.slane %v242, %v246
    %v257 = vunpack.c.l.b16 %v234
    %v258 = vunpack.c.l.b16 %v235
    %v259 = vunpack.c.l.b16 %v236
    %v260 = vunpack.c.l.b16 %v237
    %v261 = vunpack.c.l.b16 %v238
    %v262 = vunpack.c.l.b16 %v239
    %v263 = vunpack.c.l.b16 %v240
    %v264 = vunpack.c.l.b16 %v241
    %v265 = vpack.c.b16 %v258, %v257
    %v266 = vpack.c.b16 %v260, %v259
    %v267 = vpack.c.b16 %v262, %v261
    %v268 = vpack.c.b16 %v264, %v263
    %v274 = vsel %vm75, %v233, 0
    %276 = vmatprep.subr.bf16.mxu0 0
    %277 = vmatpush1.bf16.msra.mxu0 %v265
    %278 = vmatprep.subr.bf16.mxu0 0
    %279 = vmatpush1.bf16.msra.mxu0 %v266
    %280 = vmatprep.subr.bf16.mxu0 0
    %281 = vmatpush1.bf16.msra.mxu0 %v267
    %282 = vmatprep.subr.bf16.mxu0 0
    %283 = vmatpush1.bf16.msra.mxu0 %v268
    %284 = vmatprep.subr.bf16.mxu0 0
    %285 = vmatpush1.bf16.msra.mxu0 0
    %286 = vmatprep.subr.bf16.mxu0 0
    %287 = vmatpush1.bf16.msra.mxu0 0
    %288 = vmatprep.subr.bf16.mxu0 0
    %289 = vmatpush1.bf16.msra.mxu0 0
    %290 = vmatprep.subr.bf16.mxu0 0
    %291 = vmatpush1.bf16.msra.mxu0 0
    %292 = vmatprep.subr.bf16.mxu0 0
    %293 = vmatpush1.bf16.msra.mxu0 0
    %294 = vmatprep.subr.bf16.mxu0 0
    %295 = vmatpush1.bf16.msra.mxu0 0
    %296 = vmatprep.subr.bf16.mxu0 0
    %297 = vmatpush1.bf16.msra.mxu0 0
    %298 = vmatprep.subr.bf16.mxu0 0
    %299 = vmatpush1.bf16.msra.mxu0 0
    %300 = vmatprep.subr.bf16.mxu0 0
    %301 = vmatpush1.bf16.msra.mxu0 0
    %302 = vmatprep.subr.bf16.mxu0 0
    %303 = vmatpush1.bf16.msra.mxu0 0
    %304 = vmatprep.subr.bf16.mxu0 0
    %305 = vmatpush1.bf16.msra.mxu0 0
    %306 = vmatprep.subr.bf16.mxu0 0
    %307 = vmatpush1.bf16.msra.mxu0 0
    %308 = vmatprep.mubr.bf16.mxu0 0
    %309 = vmatmul.mubr.bf16.gmra.mrb[0].mxu0 %v274
    %v310 = vpop.f32.mrb[0].mxu0
    %v311 = vadd.f32 %v247, %v310
    %v312 = vpop.f32.mrb[0].mxu0
    %v313 = vpop.f32.mrb[0].mxu0
    %v314 = vpop.f32.mrb[0].mxu0
    %315 = vdwg.mxu0
    %v316 = vmax.f32 %v311, 0.0
    %v317 = vpack.c.bf16 %v316, %v316
    %v318 = vld [vmem:[%s7] sm:$0xf]
    %v319 = vld [vmem:[%s7 + $0x4] sm:$0xf]
    %v320 = vld [vmem:[%s7 + $0x8] sm:$0xf]
    %v321 = vld [vmem:[%s7 + $0xc] sm:$0xf]
    %v322 = vld [vmem:[%s8] sm:$0x1]
    %v324 = vlaneseq
    %v325 = vshrl.u32 %v324, 7
    %v326 = vsub.s32 0, %v325
    %v327 = vrot.slane %v322, %v326
    %v333 = vunpack.c.l.b16 %v318
    %v334 = vunpack.c.l.b16 %v319
    %v335 = vunpack.c.l.b16 %v320
    %v336 = vunpack.c.l.b16 %v321
    %v337 = vpack.c.b16 %v334, %v333
    %v338 = vpack.c.b16 %v336, %v335
    %vm341 = vcmask 261120
    %v343 = vsel %vm341, %v317, 0
    %345 = vmatprep.subr.bf16.mxu0 0
    %346 = vmatpush1.bf16.msra.mxu0 %v337
    %347 = vmatprep.subr.bf16.mxu0 0
    %348 = vmatpush1.bf16.msra.mxu0 %v338
    %349 = vmatprep.subr.bf16.mxu0 0
    %350 = vmatpush1.bf16.msra.mxu0 0
    %351 = vmatprep.subr.bf16.mxu0 0
    %352 = vmatpush1.bf16.msra.mxu0 0
    %353 = vmatprep.subr.bf16.mxu0 0
    %354 = vmatpush1.bf16.msra.mxu0 0
    %355 = vmatprep.subr.bf16.mxu0 0
    %356 = vmatpush1.bf16.msra.mxu0 0
    %357 = vmatprep.subr.bf16.mxu0 0
    %358 = vmatpush1.bf16.msra.mxu0 0
    %359 = vmatprep.subr.bf16.mxu0 0
    %360 = vmatpush1.bf16.msra.mxu0 0
    %361 = vmatprep.subr.bf16.mxu0 0
    %362 = vmatpush1.bf16.msra.mxu0 0
    %363 = vmatprep.subr.bf16.mxu0 0
    %364 = vmatpush1.bf16.msra.mxu0 0
    %365 = vmatprep.subr.bf16.mxu0 0
    %366 = vmatpush1.bf16.msra.mxu0 0
    %367 = vmatprep.subr.bf16.mxu0 0
    %368 = vmatpush1.bf16.msra.mxu0 0
    %369 = vmatprep.subr.bf16.mxu0 0
    %370 = vmatpush1.bf16.msra.mxu0 0
    %371 = vmatprep.subr.bf16.mxu0 0
    %372 = vmatpush1.bf16.msra.mxu0 0
    %373 = vmatprep.subr.bf16.mxu0 0
    %374 = vmatpush1.bf16.msra.mxu0 0
    %375 = vmatprep.subr.bf16.mxu0 0
    %376 = vmatpush1.bf16.msra.mxu0 0
    %377 = vmatprep.mubr.bf16.mxu0 0
    %378 = vmatmul.mubr.bf16.gmra.mrb[0].mxu0 %v343
    %v379 = vpop.f32.mrb[0].mxu0
    %v380 = vadd.f32 %v327, %v379
    %v381 = vpop.f32.mrb[0].mxu0
    %v382 = vpop.f32.mrb[0].mxu0
    %v383 = vpop.f32.mrb[0].mxu0
    %384 = vdwg.mxu0
    %385 = vst.msk [vmem:[#allocation2] sm:$0xff] %vm341, %v380
    // Predicated region
    $region38: #{deep_svdd_forward.1} parent=1 // pred_check
      _
    $region39: #{deep_svdd_forward.1} parent=1 // pred_check_branch
      %387 = sbr.rel (0) target = $region41
    $region40: #{deep_svdd_forward.1} parent=1 // pred_region
      %s389 = ssub.s32 128, 128
      %390 = vsyncadd [#allocation3], %s389
      %s392 = sshll.u32 [#allocation2], 4
      %s393 = int_to_ptr.vmem [resolvable:$true] %s392
      %395 = dma.vmem_to_hbm [thread:$0]  %s393, 128, %s9, [#allocation3]
    $region41: #{deep_svdd_forward.1} parent=1 // pred_fallthru
      _
    // Predicated region
    $region42: #{deep_svdd_forward.1} parent=1 // pred_check
      _
    $region43: #{deep_svdd_forward.1} parent=1 // pred_check_branch
      %397 = sbr.rel (0) target = $region45
    $region44: #{deep_svdd_forward.1} parent=1 // pred_region
      %398 = dma.done [#allocation3], 128
    $region45: #{deep_svdd_forward.1} parent=1 // pred_fallthru
      _
    %399 = vsyncpa [#allocation3], 1

</llo_original>
